<compile_context>
chip_gen: v7x
topology: tpu7x:2x2x1
jax: 0.10.0
libtpu: 0.0.40
codegen_flags: <defaults>
</compile_context>

<pallas_src>
import functools

import jax
import jax.numpy as jnp
from jax.experimental import pallas as pl
from jax.experimental.pallas import tpu as pltpu


def _round_up(n, m):
    return ((n + m - 1) // m) * m


def _regression_wrapper_kernel(x_ref, w_ref, b_ref, o_ref, *,
                               use_residuals, tn, single_panel):
    """o = [x +] x @ W' + b'  (normalization already folded into W'/b')."""
    x = x_ref[...]                                           # (tb, E) f32
    # bf16 (or f32) operands feed the MXU at native rate; accumulate in f32.
    y = jnp.dot(x.astype(w_ref.dtype), w_ref[...],
                preferred_element_type=jnp.float32)          # (tb, tn) f32
    y = y + b_ref[...]                                       # (1, tn) broadcast
    if use_residuals:
        if single_panel:
            y = x + y                                        # residual in f32
        else:
            j = pl.program_id(0)
            col = pl.multiple_of(j * tn, 128)
            y = x_ref[:, pl.ds(col, tn)] + y                 # matching x columns
    o_ref[...] = y.astype(o_ref.dtype)                       # downcast on store only


def fold_regression_params(input_mean, input_std, output_mean, output_std,
                           weight, bias, weight_dtype=jnp.bfloat16):
    """One-time algebraic fold of the normalization into W'/b'.

      y = ((x - im)/istd) @ W * ostd + b*ostd + om  ==  x @ W' + b'
      W' = diag(1/istd) @ W @ diag(ostd)
      b' = ostd * (b - (im/istd) @ W) + om

    Call this ONCE when the wrapper's parameters are set/frozen and reuse the
    result across forward calls (it reads the full f32 weight).
    NOTE: like the PyTorch module, no epsilon guard on input_std — a zero std
    produces inf/NaN (here it poisons the whole folded column).
    """
    inv_istd = 1.0 / input_std.astype(jnp.float32)
    w32 = weight.astype(jnp.float32)
    w_folded = (w32 * inv_istd[:, None]) * output_std.astype(jnp.float32)[None, :]
    b_folded = (output_std * (bias - (input_mean * inv_istd) @ w32) + output_mean)
    e = weight.shape[0]
    return (w_folded.astype(weight_dtype),
            b_folded.reshape(1, e).astype(jnp.float32))


def regression_wrapper_forward(x, w_folded, b_folded, *, use_residuals=True,
                               block_b=512, out_dtype=None):
    """x: (B, E) float32.  w_folded: (E, E) (bf16 or f32).  b_folded: (1, E) f32."""
    B, E = x.shape
    assert w_folded.shape == (E, E) and b_folded.shape == (1, E)
    out_dtype = x.dtype if out_dtype is None else out_dtype
    w_bytes = jnp.dtype(w_folded.dtype).itemsize
    o_bytes = jnp.dtype(out_dtype).itemsize

    # ---- generation-aware VMEM budget ------------------------------------
    try:
        vmem_cap = int(pltpu.get_tpu_info().vmem_capacity_bytes)
    except Exception:
        vmem_cap = 64 << 20          # conservative (v7x per-TC)
    budget = int(0.85 * vmem_cap)    # ≈56 MiB on v7x, ≈111 MiB on v5e/v6e

    # ---- output-column panels (large-E path) ------------------------------
    if E * E * w_bytes <= budget // 2 or E % 128 != 0:
        tn = E                       # whole weight VMEM-resident
    else:
        tn = 128
        cand = (E // 128) * 128
        while cand >= 128:
            if E % cand == 0 and E * cand * w_bytes <= budget // 2:
                tn = cand
                break
            cand -= 128
    num_panels = pl.cdiv(E, tn)
    single_panel = (num_panels == 1)
    n_w_buf = 1 if single_panel else 2   # Buffered(1) when truly resident

    # ---- B tile: MXU-aligned (256 also covers v5e's 128), sized to VMEM ----
    tb = min(block_b, _round_up(B, 8))
    if tb >= 256:
        tb = (tb // 256) * 256
    elif tb >= 128:
        tb = (tb // 128) * 128
    else:
        tb = _round_up(tb, 8)

    def vmem_needed(t):
        return (2 * t * E * 4              # x tiles (double-buffered, f32)
                + 2 * t * tn * o_bytes     # out tiles (double-buffered)
                + n_w_buf * E * tn * w_bytes
                + 2 * tn * 4               # bias
                + t * E * w_bytes          # in-kernel bf16 cast of x
                + t * tn * 4               # f32 matmul result
                + (2 << 20))               # slack

    while tb > 8 and vmem_needed(tb) > budget:
        tb = max(8, (tb // 2 // 8) * 8)

    # No padding / slicing: ragged last row tile handled by Pallas boundary masking.
    grid = (num_panels, pl.cdiv(B, tb))    # (column panels [outer], row tiles [inner])

    kernel = functools.partial(_regression_wrapper_kernel,
                               use_residuals=use_residuals, tn=tn,
                               single_panel=single_panel)

    cost = pl.CostEstimate(
        flops=2 * B * E * E,
        transcendentals=0,
        bytes_accessed=(B * E * 4 * num_panels   # x (re-read once per panel)
                        + B * E * o_bytes        # out
                        + E * E * w_bytes        # weight (one pass)
                        + E * 4))                # bias

    def build(single_buffer_resident):
        resident_kw = ({"pipeline_mode": pl.Buffered(1)}
                       if single_buffer_resident else {})
        return pl.pallas_call(
            kernel,
            out_shape=jax.ShapeDtypeStruct((B, E), out_dtype),
            grid=grid,
            in_specs=[
                pl.BlockSpec((tb, E), lambda j, i: (i, 0)),               # x: streamed rows
                pl.BlockSpec((E, tn), lambda j, i: (0, j), **resident_kw),  # W' panel: resident
                pl.BlockSpec((1, tn), lambda j, i: (0, j), **resident_kw),  # b' panel: resident
            ],
            out_specs=pl.BlockSpec((tb, tn), lambda j, i: (i, j)),
            compiler_params=pltpu.CompilerParams(
                dimension_semantics=("parallel", "parallel"),
                vmem_limit_bytes=budget),
            cost_estimate=cost,
        )

    try:
        return build(single_panel)(x, w_folded, b_folded)
    except Exception:
        if not single_panel:
            raise
        # Fallback: default double-buffering if Buffered(1) is rejected.
        return build(False)(x, w_folded, b_folded)


if __name__ == "__main__":
    B, E = 32, 256   # small shapes (module default embedding_size is 1024)

    key = jax.random.PRNGKey(0)
    kx, kim, kis, kom, kos, kw, kb = jax.random.split(key, 7)

    x = jax.random.normal(kx, (B, E), dtype=jnp.float32)

    # Normalization parameters (module defaults are zeros/ones; use non-trivial
    # deterministic values to exercise the math).
    input_mean = 0.1 * jax.random.normal(kim, (E,), dtype=jnp.float32)
    input_std = 1.0 + 0.1 * jnp.abs(jax.random.normal(kis, (E,), dtype=jnp.float32))
    output_mean = 0.1 * jax.random.normal(kom, (E,), dtype=jnp.float32)
    output_std = 1.0 + 0.1 * jnp.abs(jax.random.normal(kos, (E,), dtype=jnp.float32))

    # Stand-in inner model: linear E -> E.
    weight = jax.random.normal(kw, (E, E), dtype=jnp.float32) / jnp.sqrt(E)
    bias = 0.01 * jax.random.normal(kb, (E,), dtype=jnp.float32)

    # One-time parameter fold, hoisted out of the per-forward path.
    w_folded, b_folded = fold_regression_params(
        input_mean, input_std, output_mean, output_std, weight, bias,
        weight_dtype=jnp.bfloat16)
    w_folded, b_folded = jax.block_until_ready((w_folded, b_folded))

    out = regression_wrapper_forward(x, w_folded, b_folded, use_residuals=True)
    out = jax.block_until_ready(out)

    # Pure-JAX f32 reference following the original (unfolded) module math.
    scaled = (x - input_mean) / input_std
    y_ref = scaled @ weight + bias
    y_ref = y_ref * output_std + output_mean
    y_ref = x + y_ref

    assert out.shape == (B, E)
    # bf16 matmul operands (f32 accumulation) -> looser tolerance than pure f32.
    assert jnp.allclose(out, y_ref, atol=5e-2, rtol=5e-2), (
        float(jnp.max(jnp.abs(out - y_ref))))

    print("KERNEL_OK")
</pallas_src>

<mosaic_0001>
module attributes {stable_mosaic.version = 11 : i64} {
  func.func @_regression_wrapper_kernel(%arg0: i32, %arg1: i32, %arg2: memref<32x256xf32, #tpu.memory_space<vmem>>, %arg3: memref<256x256xbf16, #tpu.memory_space<vmem>>, %arg4: memref<1x256xf32, #tpu.memory_space<vmem>>, %arg5: memref<32x256xf32, #tpu.memory_space<vmem>>) attributes {dimension_semantics = [#tpu.dimension_semantics<parallel>, #tpu.dimension_semantics<parallel>], iteration_bounds = array<i64: 1, 1>, scalar_prefetch = 0 : i64, scratch_operands = 0 : i64, tpu.core_type = #tpu.core_type<tc>, window_params = [{transform_indices = @transform_0, window_bounds = array<i64: 32, 256>}, {pipeline_mode = #tpu.pipeline_mode<synchronous>, transform_indices = @transform_1, window_bounds = array<i64: 256, 256>}, {pipeline_mode = #tpu.pipeline_mode<synchronous>, transform_indices = @transform_2, window_bounds = array<i64: 1, 256>}, {transform_indices = @transform_3, window_bounds = array<i64: 32, 256>}]} {
    %c0 = arith.constant 0 : index
    %c0_0 = arith.constant 0 : index
    %0 = vector.load %arg2[%c0, %c0_0] : memref<32x256xf32, #tpu.memory_space<vmem>>, vector<32x256xf32>
    %1 = arith.truncf %0 : vector<32x256xf32> to vector<32x256xbf16>
    %c0_1 = arith.constant 0 : index
    %c0_2 = arith.constant 0 : index
    %2 = vector.load %arg3[%c0_1, %c0_2] : memref<256x256xbf16, #tpu.memory_space<vmem>>, vector<256x256xbf16>
    %cst = arith.constant dense<0.000000e+00> : vector<32x256xf32>
    %3 = tpu.matmul %1, %2, %cst {dimension_numbers = #tpu.dot_dimension_numbers<[1], [0], [0], [1], [0, 0, 1, 1], [], []>} : vector<32x256xbf16>, vector<256x256xbf16>, vector<32x256xf32> -> vector<32x256xf32>
    %c0_3 = arith.constant 0 : index
    %c0_4 = arith.constant 0 : index
    %4 = vector.load %arg4[%c0_3, %c0_4] : memref<1x256xf32, #tpu.memory_space<vmem>>, vector<1x256xf32>
    %5 = vector.broadcast %4 : vector<1x256xf32> to vector<32x256xf32>
    %6 = arith.addf %3, %5 : vector<32x256xf32>
    %7 = arith.addf %0, %6 : vector<32x256xf32>
    %c0_5 = arith.constant 0 : index
    %c0_6 = arith.constant 0 : index
    %8 = vector.load %arg5[%c0_5, %c0_6] : memref<32x256xf32, #tpu.memory_space<vmem>>, vector<32x256xf32>
    tpu.vector_store %arg5[%c0_5, %c0_6], %7 {strides = array<i32>} : memref<32x256xf32, #tpu.memory_space<vmem>>, vector<32x256xf32>,
    return
  }
  func.func @transform_0(%arg0: i32, %arg1: i32) -> (i32, i32) {
    %c0_i32 = arith.constant 0 : i32
    %c0_i32_0 = arith.constant 0 : i32
    return %arg1, %c0_i32 : i32, i32
  }
  func.func @transform_1(%arg0: i32, %arg1: i32) -> (i32, i32) {
    %c0_i32 = arith.constant 0 : i32
    %c0_i32_0 = arith.constant 0 : i32
    return %c0_i32, %arg0 : i32, i32
  }
  func.func @transform_2(%arg0: i32, %arg1: i32) -> (i32, i32) {
    %c0_i32 = arith.constant 0 : i32
    %c0_i32_0 = arith.constant 0 : i32
    return %c0_i32, %arg0 : i32, i32
  }
  func.func @transform_3(%arg0: i32, %arg1: i32) -> (i32, i32) {
    %c0_i32 = arith.constant 0 : i32
    return %arg1, %arg0 : i32, i32
  }
}

module attributes {stable_mosaic.version = 11 : i64} {
  func.func @_regression_wrapper_kernel(%arg0: i32, %arg1: i32, %arg2: memref<32x256xf32, #tpu.memory_space<vmem>>, %arg3: memref<256x256xbf16, #tpu.memory_space<vmem>>, %arg4: memref<1x256xf32, #tpu.memory_space<vmem>>, %arg5: memref<32x256xf32, #tpu.memory_space<vmem>>) attributes {dimension_semantics = [#tpu.dimension_semantics<parallel>, #tpu.dimension_semantics<parallel>], iteration_bounds = array<i64: 1, 1>, scalar_prefetch = 0 : i64, scratch_operands = 0 : i64, tpu.core_type = #tpu.core_type<tc>, window_params = [{transform_indices = @transform_0, window_bounds = array<i64: 32, 256>}, {transform_indices = @transform_1, window_bounds = array<i64: 256, 256>}, {transform_indices = @transform_2, window_bounds = array<i64: 1, 256>}, {transform_indices = @transform_3, window_bounds = array<i64: 32, 256>}]} {
    %c0 = arith.constant 0 : index
    %c0_0 = arith.constant 0 : index
    %0 = vector.load %arg2[%c0, %c0_0] : memref<32x256xf32, #tpu.memory_space<vmem>>, vector<32x256xf32>
    %1 = arith.truncf %0 : vector<32x256xf32> to vector<32x256xbf16>
    %c0_1 = arith.constant 0 : index
    %c0_2 = arith.constant 0 : index
    %2 = vector.load %arg3[%c0_1, %c0_2] : memref<256x256xbf16, #tpu.memory_space<vmem>>, vector<256x256xbf16>
    %cst = arith.constant dense<0.000000e+00> : vector<32x256xf32>
    %3 = tpu.matmul %1, %2, %cst {dimension_numbers = #tpu.dot_dimension_numbers<[1], [0], [0], [1], [0, 0, 1, 1], [], []>} : vector<32x256xbf16>, vector<256x256xbf16>, vector<32x256xf32> -> vector<32x256xf32>
    %c0_3 = arith.constant 0 : index
    %c0_4 = arith.constant 0 : index
    %4 = vector.load %arg4[%c0_3, %c0_4] : memref<1x256xf32, #tpu.memory_space<vmem>>, vector<1x256xf32>
    %5 = vector.broadcast %4 : vector<1x256xf32> to vector<32x256xf32>
    %6 = arith.addf %3, %5 : vector<32x256xf32>
    %7 = arith.addf %0, %6 : vector<32x256xf32>
    %c0_5 = arith.constant 0 : index
    %c0_6 = arith.constant 0 : index
    %8 = vector.load %arg5[%c0_5, %c0_6] : memref<32x256xf32, #tpu.memory_space<vmem>>, vector<32x256xf32>
    tpu.vector_store %arg5[%c0_5, %c0_6], %7 {strides = array<i32>} : memref<32x256xf32, #tpu.memory_space<vmem>>, vector<32x256xf32>,
    return
  }
  func.func @transform_0(%arg0: i32, %arg1: i32) -> (i32, i32) {
    %c0_i32 = arith.constant 0 : i32
    %c0_i32_0 = arith.constant 0 : i32
    return %arg1, %c0_i32 : i32, i32
  }
  func.func @transform_1(%arg0: i32, %arg1: i32) -> (i32, i32) {
    %c0_i32 = arith.constant 0 : i32
    %c0_i32_0 = arith.constant 0 : i32
    return %c0_i32, %arg0 : i32, i32
  }
  func.func @transform_2(%arg0: i32, %arg1: i32) -> (i32, i32) {
    %c0_i32 = arith.constant 0 : i32
    %c0_i32_0 = arith.constant 0 : i32
    return %c0_i32, %arg0 : i32, i32
  }
  func.func @transform_3(%arg0: i32, %arg1: i32) -> (i32, i32) {
    %c0_i32 = arith.constant 0 : i32
    return %arg1, %arg0 : i32, i32
  }
}

</mosaic_0001>

<llo_original>
// kernel: tpu_custom_call.1
$region0: #{tpu_custom_call.1}
  #allocation0 [shape = 'u32[]', space=smem, size = 0x4, offset = 0x4, fixed_abs, tag = 'smem constant byte address 0x4 - core index']
  #allocation1 [shape = 'u32[144,128]{1,0:T(1,128)}', space=vmem, size = 0x12000, scoped, tag = 'internal scratch']
  %s0 = inlined_call_operand.hbm [shape: f32[32,256], index: 0, kind: input, shape index: {}]
  %s1 = inlined_call_operand.hbm [shape: bf16[256,256], index: 1, kind: input, shape index: {}]
  %s2 = inlined_call_operand.vmem [shape: f32[1,256], index: 2, kind: input, shape index: {}]
  %s3 = inlined_call_operand.hbm [shape: f32[32,256], index: 3, kind: output, shape index: {}]
  %s4 = sld [smem:[#allocation0]]
  $region30: #{tpu_custom_call.1} parent=0
    _
  %s6 = ssub.s32 1, %s4
  %s7 = scalar_select 0, %s6, %s4
  $region1: #{tpu_custom_call.1} parent=0
    #allocation2 [shape = 'u8[32768]{0}', space=vmem, size = 0x8000, scoped, tag = 'input window, operand 0, single buffered']
    #allocation3 [shape = 's32[1]{0}', space=sflag, size = 0x4, scoped, tag = 'scoped memory for tpu_custom_call.1']
    #allocation4 [shape = 's32[1]{0}', space=sflag, size = 0x4, scoped, tag = 'scoped memory for tpu_custom_call.1']
    #allocation5 [shape = 'u8[131072]{0}', space=vmem, size = 0x20000, scoped, tag = 'input window, operand 1, single buffered']
    #allocation6 [shape = 's32[1]{0}', space=sflag, size = 0x4, scoped, tag = 'scoped memory for tpu_custom_call.1']
    #allocation7 [shape = 'u8[32768]{0}', space=vmem, size = 0x8000, scoped, tag = 'output window, operand 0, single buffered']
    %8 = vsyncpa [#allocation3], 0
    %9 = vsyncpa [#allocation6], 0
    %10 = vsyncpa [#allocation4], 0
    // Predicated region
    $region2: #{tpu_custom_call.1} parent=1 // pred_check
      _
    $region3: #{tpu_custom_call.1} parent=1 // pred_check_branch
      %12 = sbr.rel (0) target = $region5
    $region4: #{tpu_custom_call.1} parent=1 // pred_region
      %s14 = ssub.s32 1024, 1024
      %15 = vsyncadd [#allocation3], %s14
      %s16 = sshll.u32 [#allocation2], 4
      %s17 = int_to_ptr.vmem [resolvable:$true] %s16
      %22 = dma.hbm_to_vmem [thread:$0]  %s0, 1024, %s17, [#allocation3], 256, 256, 16
    $region5: #{tpu_custom_call.1} parent=1 // pred_fallthru
      _
    // Predicated region
    $region6: #{tpu_custom_call.1} parent=1 // pred_check
      _
    $region7: #{tpu_custom_call.1} parent=1 // pred_check_branch
      %24 = sbr.rel (0) target = $region9
    $region8: #{tpu_custom_call.1} parent=1 // pred_region
      %s26 = ssub.s32 4096, 4096
      %27 = vsyncadd [#allocation6], %s26
      %s28 = sshll.u32 [#allocation5], 4
      %s29 = int_to_ptr.vmem [resolvable:$true] %s28
      %34 = dma.hbm_to_vmem [thread:$0]  %s1, 4096, %s29, [#allocation6], 128, 128, 8
    $region9: #{tpu_custom_call.1} parent=1 // pred_fallthru
      _
    // Predicated region
    $region10: #{tpu_custom_call.1} parent=1 // pred_check
      _
    $region11: #{tpu_custom_call.1} parent=1 // pred_check_branch
      %36 = sbr.rel (0) target = $region13
    $region12: #{tpu_custom_call.1} parent=1 // pred_region
      _
    $region13: #{tpu_custom_call.1} parent=1 // pred_fallthru
      _
    // Predicated region
    $region14: #{tpu_custom_call.1} parent=1 // pred_check
      _
    $region15: #{tpu_custom_call.1} parent=1 // pred_check_branch
      %38 = sbr.rel (0) target = $region17
    $region16: #{tpu_custom_call.1} parent=1 // pred_region
      %39 = dma.done [#allocation3], 1024
    $region17: #{tpu_custom_call.1} parent=1 // pred_fallthru
      _
    // Predicated region
    $region18: #{tpu_custom_call.1} parent=1 // pred_check
      _
    $region19: #{tpu_custom_call.1} parent=1 // pred_check_branch
      %41 = sbr.rel (0) target = $region21
    $region20: #{tpu_custom_call.1} parent=1 // pred_region
      %42 = dma.done [#allocation6], 4096
    $region21: #{tpu_custom_call.1} parent=1 // pred_fallthru
      _
    %v43 = vld [vmem:[#allocation2] sm:$0xff]
    %v44 = vld [vmem:[#allocation2 + $0x8] sm:$0xff]
    %v45 = vld [vmem:[#allocation2 + $0x10] sm:$0xff]
    %v46 = vld [vmem:[#allocation2 + $0x18] sm:$0xff]
    %v47 = vld [vmem:[#allocation2 + $0x20] sm:$0xff]
    %v48 = vld [vmem:[#allocation2 + $0x28] sm:$0xff]
    %v49 = vld [vmem:[#allocation2 + $0x30] sm:$0xff]
    %v50 = vld [vmem:[#allocation2 + $0x38] sm:$0xff]
    %v51 = vpack.c.bf16 %v45, %v43
    %v52 = vpack.c.bf16 %v46, %v44
    %v53 = vpack.c.bf16 %v49, %v47
    %v54 = vpack.c.bf16 %v50, %v48
    %v55 = vld [vmem:[#allocation5] sm:$0xff]
    %v56 = vld [vmem:[#allocation5 + $0x8] sm:$0xff]
    %v57 = vld [vmem:[#allocation5 + $0x10] sm:$0xff]
    %v58 = vld [vmem:[#allocation5 + $0x18] sm:$0xff]
    %v59 = vld [vmem:[#allocation5 + $0x20] sm:$0xff]
    %v60 = vld [vmem:[#allocation5 + $0x28] sm:$0xff]
    %v61 = vld [vmem:[#allocation5 + $0x30] sm:$0xff]
    %v62 = vld [vmem:[#allocation5 + $0x38] sm:$0xff]
    %v63 = vld [vmem:[#allocation5 + $0x40] sm:$0xff]
    %v64 = vld [vmem:[#allocation5 + $0x48] sm:$0xff]
    %v65 = vld [vmem:[#allocation5 + $0x50] sm:$0xff]
    %v66 = vld [vmem:[#allocation5 + $0x58] sm:$0xff]
    %v67 = vld [vmem:[#allocation5 + $0x60] sm:$0xff]
    %v68 = vld [vmem:[#allocation5 + $0x68] sm:$0xff]
    %v69 = vld [vmem:[#allocation5 + $0x70] sm:$0xff]
    %v70 = vld [vmem:[#allocation5 + $0x78] sm:$0xff]
    %v71 = vld [vmem:[#allocation5 + $0x80] sm:$0xff]
    %v72 = vld [vmem:[#allocation5 + $0x88] sm:$0xff]
    %v73 = vld [vmem:[#allocation5 + $0x90] sm:$0xff]
    %v74 = vld [vmem:[#allocation5 + $0x98] sm:$0xff]
    %v75 = vld [vmem:[#allocation5 + $0xa0] sm:$0xff]
    %v76 = vld [vmem:[#allocation5 + $0xa8] sm:$0xff]
    %v77 = vld [vmem:[#allocation5 + $0xb0] sm:$0xff]
    %v78 = vld [vmem:[#allocation5 + $0xb8] sm:$0xff]
    %v79 = vld [vmem:[#allocation5 + $0xc0] sm:$0xff]
    %v80 = vld [vmem:[#allocation5 + $0xc8] sm:$0xff]
    %v81 = vld [vmem:[#allocation5 + $0xd0] sm:$0xff]
    %v82 = vld [vmem:[#allocation5 + $0xd8] sm:$0xff]
    %v83 = vld [vmem:[#allocation5 + $0xe0] sm:$0xff]
    %v84 = vld [vmem:[#allocation5 + $0xe8] sm:$0xff]
    %v85 = vld [vmem:[#allocation5 + $0xf0] sm:$0xff]
    %v86 = vld [vmem:[#allocation5 + $0xf8] sm:$0xff]
    %v87 = vld [vmem:[%s2] sm:$0x3]
    %v89 = vlaneseq
    %v90 = vshrl.u32 %v89, 7
    %v91 = vsub.s32 0, %v90
    %v92 = vrot.slane %v87, %v91
    %v93 = vlaneseq
    %v94 = vshrl.u32 %v93, 7
    %v95 = vsub.s32 1, %v94
    %v96 = vrot.slane %v87, %v95
    %v131 = vunpack.c.l.b16 %v55
    %v132 = vunpack.c.h.b16 %v55
    %v133 = vunpack.c.l.b16 %v56
    %v134 = vunpack.c.h.b16 %v56
    %v135 = vunpack.c.l.b16 %v57
    %v136 = vunpack.c.h.b16 %v57
    %v137 = vunpack.c.l.b16 %v58
    %v138 = vunpack.c.h.b16 %v58
    %v139 = vunpack.c.l.b16 %v59
    %v140 = vunpack.c.h.b16 %v59
    %v141 = vunpack.c.l.b16 %v60
    %v142 = vunpack.c.h.b16 %v60
    %v143 = vunpack.c.l.b16 %v61
    %v144 = vunpack.c.h.b16 %v61
    %v145 = vunpack.c.l.b16 %v62
    %v146 = vunpack.c.h.b16 %v62
    %v147 = vunpack.c.l.b16 %v63
    %v148 = vunpack.c.h.b16 %v63
    %v149 = vunpack.c.l.b16 %v64
    %v150 = vunpack.c.h.b16 %v64
    %v151 = vunpack.c.l.b16 %v65
    %v152 = vunpack.c.h.b16 %v65
    %v153 = vunpack.c.l.b16 %v66
    %v154 = vunpack.c.h.b16 %v66
    %v155 = vunpack.c.l.b16 %v67
    %v156 = vunpack.c.h.b16 %v67
    %v157 = vunpack.c.l.b16 %v68
    %v158 = vunpack.c.h.b16 %v68
    %v159 = vunpack.c.l.b16 %v69
    %v160 = vunpack.c.h.b16 %v69
    %v161 = vunpack.c.l.b16 %v70
    %v162 = vunpack.c.h.b16 %v70
    %v163 = vunpack.c.l.b16 %v71
    %v164 = vunpack.c.h.b16 %v71
    %v165 = vunpack.c.l.b16 %v72
    %v166 = vunpack.c.h.b16 %v72
    %v167 = vunpack.c.l.b16 %v73
    %v168 = vunpack.c.h.b16 %v73
    %v169 = vunpack.c.l.b16 %v74
    %v170 = vunpack.c.h.b16 %v74
    %v171 = vunpack.c.l.b16 %v75
    %v172 = vunpack.c.h.b16 %v75
    %v173 = vunpack.c.l.b16 %v76
    %v174 = vunpack.c.h.b16 %v76
    %v175 = vunpack.c.l.b16 %v77
    %v176 = vunpack.c.h.b16 %v77
    %v177 = vunpack.c.l.b16 %v78
    %v178 = vunpack.c.h.b16 %v78
    %v179 = vunpack.c.l.b16 %v79
    %v180 = vunpack.c.h.b16 %v79
    %v181 = vunpack.c.l.b16 %v80
    %v182 = vunpack.c.h.b16 %v80
    %v183 = vunpack.c.l.b16 %v81
    %v184 = vunpack.c.h.b16 %v81
    %v185 = vunpack.c.l.b16 %v82
    %v186 = vunpack.c.h.b16 %v82
    %v187 = vunpack.c.l.b16 %v83
    %v188 = vunpack.c.h.b16 %v83
    %v189 = vunpack.c.l.b16 %v84
    %v190 = vunpack.c.h.b16 %v84
    %v191 = vunpack.c.l.b16 %v85
    %v192 = vunpack.c.h.b16 %v85
    %v193 = vunpack.c.l.b16 %v86
    %v194 = vunpack.c.h.b16 %v86
    %v195 = vpack.c.b16 %v133, %v131
    %v196 = vpack.c.b16 %v134, %v132
    %v197 = vpack.c.b16 %v137, %v135
    %v198 = vpack.c.b16 %v138, %v136
    %v199 = vpack.c.b16 %v141, %v139
    %v200 = vpack.c.b16 %v142, %v140
    %v201 = vpack.c.b16 %v145, %v143
    %v202 = vpack.c.b16 %v146, %v144
    %v203 = vpack.c.b16 %v149, %v147
    %v204 = vpack.c.b16 %v150, %v148
    %v205 = vpack.c.b16 %v153, %v151
    %v206 = vpack.c.b16 %v154, %v152
    %v207 = vpack.c.b16 %v157, %v155
    %v208 = vpack.c.b16 %v158, %v156
    %v209 = vpack.c.b16 %v161, %v159
    %v210 = vpack.c.b16 %v162, %v160
    %v211 = vpack.c.b16 %v165, %v163
    %v212 = vpack.c.b16 %v166, %v164
    %v213 = vpack.c.b16 %v169, %v167
    %v214 = vpack.c.b16 %v170, %v168
    %v215 = vpack.c.b16 %v173, %v171
    %v216 = vpack.c.b16 %v174, %v172
    %v217 = vpack.c.b16 %v177, %v175
    %v218 = vpack.c.b16 %v178, %v176
    %v219 = vpack.c.b16 %v181, %v179
    %v220 = vpack.c.b16 %v182, %v180
    %v221 = vpack.c.b16 %v185, %v183
    %v222 = vpack.c.b16 %v186, %v184
    %v223 = vpack.c.b16 %v189, %v187
    %v224 = vpack.c.b16 %v190, %v188
    %v225 = vpack.c.b16 %v193, %v191
    %v226 = vpack.c.b16 %v194, %v192
    %259 = vmatprep.subr.bf16.mxu0 %v196
    %260 = vmatpush1.bf16.msra.mxu0 %v195
    %261 = vmatprep.subr.bf16.mxu0 %v198
    %262 = vmatpush1.bf16.msra.mxu0 %v197
    %263 = vmatprep.subr.bf16.mxu0 %v200
    %264 = vmatpush1.bf16.msra.mxu0 %v199
    %265 = vmatprep.subr.bf16.mxu0 %v202
    %266 = vmatpush1.bf16.msra.mxu0 %v201
    %267 = vmatprep.subr.bf16.mxu0 %v204
    %268 = vmatpush1.bf16.msra.mxu0 %v203
    %269 = vmatprep.subr.bf16.mxu0 %v206
    %270 = vmatpush1.bf16.msra.mxu0 %v205
    %271 = vmatprep.subr.bf16.mxu0 %v208
    %272 = vmatpush1.bf16.msra.mxu0 %v207
    %273 = vmatprep.subr.bf16.mxu0 %v210
    %274 = vmatpush1.bf16.msra.mxu0 %v209
    %275 = vmatprep.subr.bf16.mxu0 %v212
    %276 = vmatpush1.bf16.msra.mxu0 %v211
    %277 = vmatprep.subr.bf16.mxu0 %v214
    %278 = vmatpush1.bf16.msra.mxu0 %v213
    %279 = vmatprep.subr.bf16.mxu0 %v216
    %280 = vmatpush1.bf16.msra.mxu0 %v215
    %281 = vmatprep.subr.bf16.mxu0 %v218
    %282 = vmatpush1.bf16.msra.mxu0 %v217
    %283 = vmatprep.subr.bf16.mxu0 %v220
    %284 = vmatpush1.bf16.msra.mxu0 %v219
    %285 = vmatprep.subr.bf16.mxu0 %v222
    %286 = vmatpush1.bf16.msra.mxu0 %v221
    %287 = vmatprep.subr.bf16.mxu0 %v224
    %288 = vmatpush1.bf16.msra.mxu0 %v223
    %289 = vmatprep.subr.bf16.mxu0 %v226
    %290 = vmatpush1.bf16.msra.mxu0 %v225
    %291 = vmatprep.mubr.bf16.mxu0 %v52
    %292 = vmatmul.mubr.bf16.gmra.mrb[0].mxu0 %v51
    %v293 = vpop.f32.mrb[0].mxu0
    %v294 = vadd.f32 %v92, %v293
    %v295 = vpop.f32.mrb[0].mxu0
    %v296 = vadd.f32 %v96, %v295
    %v297 = vpop.f32.mrb[0].mxu0
    %v298 = vadd.f32 %v92, %v297
    %v299 = vpop.f32.mrb[0].mxu0
    %v300 = vadd.f32 %v96, %v299
    %301 = vmatprep.mubr.bf16.mxu0 %v54
    %302 = vmatmul.mubr.bf16.gmra.mrb[0].mxu0 %v53
    %v303 = vpop.f32.mrb[0].mxu0
    %v304 = vadd.f32 %v92, %v303
    %v305 = vpop.f32.mrb[0].mxu0
    %v306 = vadd.f32 %v96, %v305
    %v307 = vpop.f32.mrb[0].mxu0
    %v308 = vadd.f32 %v92, %v307
    %v309 = vpop.f32.mrb[0].mxu0
    %v310 = vadd.f32 %v96, %v309
    %311 = vdwg.mxu0
    %v312 = vadd.f32 %v43, %v294
    %v313 = vadd.f32 %v44, %v296
    %v314 = vadd.f32 %v45, %v298
    %v315 = vadd.f32 %v46, %v300
    %v316 = vadd.f32 %v47, %v304
    %v317 = vadd.f32 %v48, %v306
    %v318 = vadd.f32 %v49, %v308
    %v319 = vadd.f32 %v50, %v310
    %320 = vst [vmem:[#allocation7] sm:$0xff] %v312
    %321 = vst [vmem:[#allocation7 + $0x8] sm:$0xff] %v313
    %322 = vst [vmem:[#allocation7 + $0x10] sm:$0xff] %v314
    %323 = vst [vmem:[#allocation7 + $0x18] sm:$0xff] %v315
    %324 = vst [vmem:[#allocation7 + $0x20] sm:$0xff] %v316
    %325 = vst [vmem:[#allocation7 + $0x28] sm:$0xff] %v317
    %326 = vst [vmem:[#allocation7 + $0x30] sm:$0xff] %v318
    %327 = vst [vmem:[#allocation7 + $0x38] sm:$0xff] %v319
    // Predicated region
    $region22: #{tpu_custom_call.1} parent=1 // pred_check
      _
    $region23: #{tpu_custom_call.1} parent=1 // pred_check_branch
      %329 = sbr.rel (0) target = $region25
    $region24: #{tpu_custom_call.1} parent=1 // pred_region
      %s331 = ssub.s32 1024, 1024
      %332 = vsyncadd [#allocation4], %s331
      %s333 = sshll.u32 [#allocation7], 4
      %s334 = int_to_ptr.vmem [resolvable:$true] %s333
      %339 = dma.vmem_to_hbm [thread:$0]  %s334, 1024, %s3, [#allocation4], 256, 256, 16
    $region25: #{tpu_custom_call.1} parent=1 // pred_fallthru
      _
    // Predicated region
    $region26: #{tpu_custom_call.1} parent=1 // pred_check
      _
    $region27: #{tpu_custom_call.1} parent=1 // pred_check_branch
      %341 = sbr.rel (0) target = $region29
    $region28: #{tpu_custom_call.1} parent=1 // pred_region
      %342 = dma.done [#allocation4], 1024
    $region29: #{tpu_custom_call.1} parent=1 // pred_fallthru
      _
    %343 = vsyncpa [#allocation3], 1
    %344 = vsyncpa [#allocation6], 1
    %345 = vsyncpa [#allocation4], 1

// kernel: tpu_custom_call.1
$region0: #{tpu_custom_call.1}
  #allocation0 [shape = 'u32[]', space=smem, size = 0x4, offset = 0x4, fixed_abs, tag = 'smem constant byte address 0x4 - core index']
  #allocation1 [shape = 'u32[144,128]{1,0:T(1,128)}', space=vmem, size = 0x12000, scoped, tag = 'internal scratch']
  %s0 = inlined_call_operand.hbm [shape: f32[32,256], index: 0, kind: input, shape index: {}]
  %s1 = inlined_call_operand.hbm [shape: bf16[256,256], index: 1, kind: input, shape index: {}]
  %s2 = inlined_call_operand.vmem [shape: f32[1,256], index: 2, kind: input, shape index: {}]
  %s3 = inlined_call_operand.hbm [shape: f32[32,256], index: 3, kind: output, shape index: {}]
  %s4 = sld [smem:[#allocation0]]
  $region30: #{tpu_custom_call.1} parent=0
    _
  %s6 = ssub.s32 1, %s4
  %s7 = scalar_select 0, %s6, %s4
  $region1: #{tpu_custom_call.1} parent=0
    #allocation2 [shape = 'u8[32768]{0}', space=vmem, size = 0x8000, scoped, tag = 'input window, operand 0, single buffered']
    #allocation3 [shape = 's32[1]{0}', space=sflag, size = 0x4, scoped, tag = 'scoped memory for tpu_custom_call.1']
    #allocation4 [shape = 's32[1]{0}', space=sflag, size = 0x4, scoped, tag = 'scoped memory for tpu_custom_call.1']
    #allocation5 [shape = 'u8[131072]{0}', space=vmem, size = 0x20000, scoped, tag = 'input window, operand 1, single buffered']
    #allocation6 [shape = 's32[1]{0}', space=sflag, size = 0x4, scoped, tag = 'scoped memory for tpu_custom_call.1']
    #allocation7 [shape = 'u8[32768]{0}', space=vmem, size = 0x8000, scoped, tag = 'output window, operand 0, single buffered']
    %8 = vsyncpa [#allocation3], 0
    %9 = vsyncpa [#allocation6], 0
    %10 = vsyncpa [#allocation4], 0
    // Predicated region
    $region2: #{tpu_custom_call.1} parent=1 // pred_check
      _
    $region3: #{tpu_custom_call.1} parent=1 // pred_check_branch
      %12 = sbr.rel (0) target = $region5
    $region4: #{tpu_custom_call.1} parent=1 // pred_region
      %s14 = ssub.s32 1024, 1024
      %15 = vsyncadd [#allocation3], %s14
      %s16 = sshll.u32 [#allocation2], 4
      %s17 = int_to_ptr.vmem [resolvable:$true] %s16
      %22 = dma.hbm_to_vmem [thread:$0]  %s0, 1024, %s17, [#allocation3], 256, 256, 16
    $region5: #{tpu_custom_call.1} parent=1 // pred_fallthru
      _
    // Predicated region
    $region6: #{tpu_custom_call.1} parent=1 // pred_check
      _
    $region7: #{tpu_custom_call.1} parent=1 // pred_check_branch
      %24 = sbr.rel (0) target = $region9
    $region8: #{tpu_custom_call.1} parent=1 // pred_region
      %s26 = ssub.s32 4096, 4096
      %27 = vsyncadd [#allocation6], %s26
      %s28 = sshll.u32 [#allocation5], 4
      %s29 = int_to_ptr.vmem [resolvable:$true] %s28
      %34 = dma.hbm_to_vmem [thread:$0]  %s1, 4096, %s29, [#allocation6], 128, 128, 8
    $region9: #{tpu_custom_call.1} parent=1 // pred_fallthru
      _
    // Predicated region
    $region10: #{tpu_custom_call.1} parent=1 // pred_check
      _
    $region11: #{tpu_custom_call.1} parent=1 // pred_check_branch
      %36 = sbr.rel (0) target = $region13
    $region12: #{tpu_custom_call.1} parent=1 // pred_region
      _
    $region13: #{tpu_custom_call.1} parent=1 // pred_fallthru
      _
    // Predicated region
    $region14: #{tpu_custom_call.1} parent=1 // pred_check
      _
    $region15: #{tpu_custom_call.1} parent=1 // pred_check_branch
      %38 = sbr.rel (0) target = $region17
    $region16: #{tpu_custom_call.1} parent=1 // pred_region
      %39 = dma.done [#allocation3], 1024
    $region17: #{tpu_custom_call.1} parent=1 // pred_fallthru
      _
    // Predicated region
    $region18: #{tpu_custom_call.1} parent=1 // pred_check
      _
    $region19: #{tpu_custom_call.1} parent=1 // pred_check_branch
      %41 = sbr.rel (0) target = $region21
    $region20: #{tpu_custom_call.1} parent=1 // pred_region
      %42 = dma.done [#allocation6], 4096
    $region21: #{tpu_custom_call.1} parent=1 // pred_fallthru
      _
    %v43 = vld [vmem:[#allocation2] sm:$0xff]
    %v44 = vld [vmem:[#allocation2 + $0x8] sm:$0xff]
    %v45 = vld [vmem:[#allocation2 + $0x10] sm:$0xff]
    %v46 = vld [vmem:[#allocation2 + $0x18] sm:$0xff]
    %v47 = vld [vmem:[#allocation2 + $0x20] sm:$0xff]
    %v48 = vld [vmem:[#allocation2 + $0x28] sm:$0xff]
    %v49 = vld [vmem:[#allocation2 + $0x30] sm:$0xff]
    %v50 = vld [vmem:[#allocation2 + $0x38] sm:$0xff]
    %v51 = vpack.c.bf16 %v45, %v43
    %v52 = vpack.c.bf16 %v46, %v44
    %v53 = vpack.c.bf16 %v49, %v47
    %v54 = vpack.c.bf16 %v50, %v48
    %v55 = vld [vmem:[#allocation5] sm:$0xff]
    %v56 = vld [vmem:[#allocation5 + $0x8] sm:$0xff]
    %v57 = vld [vmem:[#allocation5 + $0x10] sm:$0xff]
    %v58 = vld [vmem:[#allocation5 + $0x18] sm:$0xff]
    %v59 = vld [vmem:[#allocation5 + $0x20] sm:$0xff]
    %v60 = vld [vmem:[#allocation5 + $0x28] sm:$0xff]
    %v61 = vld [vmem:[#allocation5 + $0x30] sm:$0xff]
    %v62 = vld [vmem:[#allocation5 + $0x38] sm:$0xff]
    %v63 = vld [vmem:[#allocation5 + $0x40] sm:$0xff]
    %v64 = vld [vmem:[#allocation5 + $0x48] sm:$0xff]
    %v65 = vld [vmem:[#allocation5 + $0x50] sm:$0xff]
    %v66 = vld [vmem:[#allocation5 + $0x58] sm:$0xff]
    %v67 = vld [vmem:[#allocation5 + $0x60] sm:$0xff]
    %v68 = vld [vmem:[#allocation5 + $0x68] sm:$0xff]
    %v69 = vld [vmem:[#allocation5 + $0x70] sm:$0xff]
    %v70 = vld [vmem:[#allocation5 + $0x78] sm:$0xff]
    %v71 = vld [vmem:[#allocation5 + $0x80] sm:$0xff]
    %v72 = vld [vmem:[#allocation5 + $0x88] sm:$0xff]
    %v73 = vld [vmem:[#allocation5 + $0x90] sm:$0xff]
    %v74 = vld [vmem:[#allocation5 + $0x98] sm:$0xff]
    %v75 = vld [vmem:[#allocation5 + $0xa0] sm:$0xff]
    %v76 = vld [vmem:[#allocation5 + $0xa8] sm:$0xff]
    %v77 = vld [vmem:[#allocation5 + $0xb0] sm:$0xff]
    %v78 = vld [vmem:[#allocation5 + $0xb8] sm:$0xff]
    %v79 = vld [vmem:[#allocation5 + $0xc0] sm:$0xff]
    %v80 = vld [vmem:[#allocation5 + $0xc8] sm:$0xff]
    %v81 = vld [vmem:[#allocation5 + $0xd0] sm:$0xff]
    %v82 = vld [vmem:[#allocation5 + $0xd8] sm:$0xff]
    %v83 = vld [vmem:[#allocation5 + $0xe0] sm:$0xff]
    %v84 = vld [vmem:[#allocation5 + $0xe8] sm:$0xff]
    %v85 = vld [vmem:[#allocation5 + $0xf0] sm:$0xff]
    %v86 = vld [vmem:[#allocation5 + $0xf8] sm:$0xff]
    %v87 = vld [vmem:[%s2] sm:$0x3]
    %v89 = vlaneseq
    %v90 = vshrl.u32 %v89, 7
    %v91 = vsub.s32 0, %v90
    %v92 = vrot.slane %v87, %v91
    %v93 = vlaneseq
    %v94 = vshrl.u32 %v93, 7
    %v95 = vsub.s32 1, %v94
    %v96 = vrot.slane %v87, %v95
    %v131 = vunpack.c.l.b16 %v55
    %v132 = vunpack.c.h.b16 %v55
    %v133 = vunpack.c.l.b16 %v56
    %v134 = vunpack.c.h.b16 %v56
    %v135 = vunpack.c.l.b16 %v57
    %v136 = vunpack.c.h.b16 %v57
    %v137 = vunpack.c.l.b16 %v58
    %v138 = vunpack.c.h.b16 %v58
    %v139 = vunpack.c.l.b16 %v59
    %v140 = vunpack.c.h.b16 %v59
    %v141 = vunpack.c.l.b16 %v60
    %v142 = vunpack.c.h.b16 %v60
    %v143 = vunpack.c.l.b16 %v61
    %v144 = vunpack.c.h.b16 %v61
    %v145 = vunpack.c.l.b16 %v62
    %v146 = vunpack.c.h.b16 %v62
    %v147 = vunpack.c.l.b16 %v63
    %v148 = vunpack.c.h.b16 %v63
    %v149 = vunpack.c.l.b16 %v64
    %v150 = vunpack.c.h.b16 %v64
    %v151 = vunpack.c.l.b16 %v65
    %v152 = vunpack.c.h.b16 %v65
    %v153 = vunpack.c.l.b16 %v66
    %v154 = vunpack.c.h.b16 %v66
    %v155 = vunpack.c.l.b16 %v67
    %v156 = vunpack.c.h.b16 %v67
    %v157 = vunpack.c.l.b16 %v68
    %v158 = vunpack.c.h.b16 %v68
    %v159 = vunpack.c.l.b16 %v69
    %v160 = vunpack.c.h.b16 %v69
    %v161 = vunpack.c.l.b16 %v70
    %v162 = vunpack.c.h.b16 %v70
    %v163 = vunpack.c.l.b16 %v71
    %v164 = vunpack.c.h.b16 %v71
    %v165 = vunpack.c.l.b16 %v72
    %v166 = vunpack.c.h.b16 %v72
    %v167 = vunpack.c.l.b16 %v73
    %v168 = vunpack.c.h.b16 %v73
    %v169 = vunpack.c.l.b16 %v74
    %v170 = vunpack.c.h.b16 %v74
    %v171 = vunpack.c.l.b16 %v75
    %v172 = vunpack.c.h.b16 %v75
    %v173 = vunpack.c.l.b16 %v76
    %v174 = vunpack.c.h.b16 %v76
    %v175 = vunpack.c.l.b16 %v77
    %v176 = vunpack.c.h.b16 %v77
    %v177 = vunpack.c.l.b16 %v78
    %v178 = vunpack.c.h.b16 %v78
    %v179 = vunpack.c.l.b16 %v79
    %v180 = vunpack.c.h.b16 %v79
    %v181 = vunpack.c.l.b16 %v80
    %v182 = vunpack.c.h.b16 %v80
    %v183 = vunpack.c.l.b16 %v81
    %v184 = vunpack.c.h.b16 %v81
    %v185 = vunpack.c.l.b16 %v82
    %v186 = vunpack.c.h.b16 %v82
    %v187 = vunpack.c.l.b16 %v83
    %v188 = vunpack.c.h.b16 %v83
    %v189 = vunpack.c.l.b16 %v84
    %v190 = vunpack.c.h.b16 %v84
    %v191 = vunpack.c.l.b16 %v85
    %v192 = vunpack.c.h.b16 %v85
    %v193 = vunpack.c.l.b16 %v86
    %v194 = vunpack.c.h.b16 %v86
    %v195 = vpack.c.b16 %v133, %v131
    %v196 = vpack.c.b16 %v134, %v132
    %v197 = vpack.c.b16 %v137, %v135
    %v198 = vpack.c.b16 %v138, %v136
    %v199 = vpack.c.b16 %v141, %v139
    %v200 = vpack.c.b16 %v142, %v140
    %v201 = vpack.c.b16 %v145, %v143
    %v202 = vpack.c.b16 %v146, %v144
    %v203 = vpack.c.b16 %v149, %v147
    %v204 = vpack.c.b16 %v150, %v148
    %v205 = vpack.c.b16 %v153, %v151
    %v206 = vpack.c.b16 %v154, %v152
    %v207 = vpack.c.b16 %v157, %v155
    %v208 = vpack.c.b16 %v158, %v156
    %v209 = vpack.c.b16 %v161, %v159
    %v210 = vpack.c.b16 %v162, %v160
    %v211 = vpack.c.b16 %v165, %v163
    %v212 = vpack.c.b16 %v166, %v164
    %v213 = vpack.c.b16 %v169, %v167
    %v214 = vpack.c.b16 %v170, %v168
    %v215 = vpack.c.b16 %v173, %v171
    %v216 = vpack.c.b16 %v174, %v172
    %v217 = vpack.c.b16 %v177, %v175
    %v218 = vpack.c.b16 %v178, %v176
    %v219 = vpack.c.b16 %v181, %v179
    %v220 = vpack.c.b16 %v182, %v180
    %v221 = vpack.c.b16 %v185, %v183
    %v222 = vpack.c.b16 %v186, %v184
    %v223 = vpack.c.b16 %v189, %v187
    %v224 = vpack.c.b16 %v190, %v188
    %v225 = vpack.c.b16 %v193, %v191
    %v226 = vpack.c.b16 %v194, %v192
    %259 = vmatprep.subr.bf16.mxu0 %v196
    %260 = vmatpush1.bf16.msra.mxu0 %v195
    %261 = vmatprep.subr.bf16.mxu0 %v198
    %262 = vmatpush1.bf16.msra.mxu0 %v197
    %263 = vmatprep.subr.bf16.mxu0 %v200
    %264 = vmatpush1.bf16.msra.mxu0 %v199
    %265 = vmatprep.subr.bf16.mxu0 %v202
    %266 = vmatpush1.bf16.msra.mxu0 %v201
    %267 = vmatprep.subr.bf16.mxu0 %v204
    %268 = vmatpush1.bf16.msra.mxu0 %v203
    %269 = vmatprep.subr.bf16.mxu0 %v206
    %270 = vmatpush1.bf16.msra.mxu0 %v205
    %271 = vmatprep.subr.bf16.mxu0 %v208
    %272 = vmatpush1.bf16.msra.mxu0 %v207
    %273 = vmatprep.subr.bf16.mxu0 %v210
    %274 = vmatpush1.bf16.msra.mxu0 %v209
    %275 = vmatprep.subr.bf16.mxu0 %v212
    %276 = vmatpush1.bf16.msra.mxu0 %v211
    %277 = vmatprep.subr.bf16.mxu0 %v214
    %278 = vmatpush1.bf16.msra.mxu0 %v213
    %279 = vmatprep.subr.bf16.mxu0 %v216
    %280 = vmatpush1.bf16.msra.mxu0 %v215
    %281 = vmatprep.subr.bf16.mxu0 %v218
    %282 = vmatpush1.bf16.msra.mxu0 %v217
    %283 = vmatprep.subr.bf16.mxu0 %v220
    %284 = vmatpush1.bf16.msra.mxu0 %v219
    %285 = vmatprep.subr.bf16.mxu0 %v222
    %286 = vmatpush1.bf16.msra.mxu0 %v221
    %287 = vmatprep.subr.bf16.mxu0 %v224
    %288 = vmatpush1.bf16.msra.mxu0 %v223
    %289 = vmatprep.subr.bf16.mxu0 %v226
    %290 = vmatpush1.bf16.msra.mxu0 %v225
    %291 = vmatprep.mubr.bf16.mxu0 %v52
    %292 = vmatmul.mubr.bf16.gmra.mrb[0].mxu0 %v51
    %v293 = vpop.f32.mrb[0].mxu0
    %v294 = vadd.f32 %v92, %v293
    %v295 = vpop.f32.mrb[0].mxu0
    %v296 = vadd.f32 %v96, %v295
    %v297 = vpop.f32.mrb[0].mxu0
    %v298 = vadd.f32 %v92, %v297
    %v299 = vpop.f32.mrb[0].mxu0
    %v300 = vadd.f32 %v96, %v299
    %301 = vmatprep.mubr.bf16.mxu0 %v54
    %302 = vmatmul.mubr.bf16.gmra.mrb[0].mxu0 %v53
    %v303 = vpop.f32.mrb[0].mxu0
    %v304 = vadd.f32 %v92, %v303
    %v305 = vpop.f32.mrb[0].mxu0
    %v306 = vadd.f32 %v96, %v305
    %v307 = vpop.f32.mrb[0].mxu0
    %v308 = vadd.f32 %v92, %v307
    %v309 = vpop.f32.mrb[0].mxu0
    %v310 = vadd.f32 %v96, %v309
    %311 = vdwg.mxu0
    %v312 = vadd.f32 %v43, %v294
    %v313 = vadd.f32 %v44, %v296
    %v314 = vadd.f32 %v45, %v298
    %v315 = vadd.f32 %v46, %v300
    %v316 = vadd.f32 %v47, %v304
    %v317 = vadd.f32 %v48, %v306
    %v318 = vadd.f32 %v49, %v308
    %v319 = vadd.f32 %v50, %v310
    %320 = vst [vmem:[#allocation7] sm:$0xff] %v312
    %321 = vst [vmem:[#allocation7 + $0x8] sm:$0xff] %v313
    %322 = vst [vmem:[#allocation7 + $0x10] sm:$0xff] %v314
    %323 = vst [vmem:[#allocation7 + $0x18] sm:$0xff] %v315
    %324 = vst [vmem:[#allocation7 + $0x20] sm:$0xff] %v316
    %325 = vst [vmem:[#allocation7 + $0x28] sm:$0xff] %v317
    %326 = vst [vmem:[#allocation7 + $0x30] sm:$0xff] %v318
    %327 = vst [vmem:[#allocation7 + $0x38] sm:$0xff] %v319
    // Predicated region
    $region22: #{tpu_custom_call.1} parent=1 // pred_check
      _
    $region23: #{tpu_custom_call.1} parent=1 // pred_check_branch
      %329 = sbr.rel (0) target = $region25
    $region24: #{tpu_custom_call.1} parent=1 // pred_region
      %s331 = ssub.s32 1024, 1024
      %332 = vsyncadd [#allocation4], %s331
      %s333 = sshll.u32 [#allocation7], 4
      %s334 = int_to_ptr.vmem [resolvable:$true] %s333
      %339 = dma.vmem_to_hbm [thread:$0]  %s334, 1024, %s3, [#allocation4], 256, 256, 16
    $region25: #{tpu_custom_call.1} parent=1 // pred_fallthru
      _
    // Predicated region
    $region26: #{tpu_custom_call.1} parent=1 // pred_check
      _
    $region27: #{tpu_custom_call.1} parent=1 // pred_check_branch
      %341 = sbr.rel (0) target = $region29
    $region28: #{tpu_custom_call.1} parent=1 // pred_region
      %342 = dma.done [#allocation4], 1024
    $region29: #{tpu_custom_call.1} parent=1 // pred_fallthru
      _
    %343 = vsyncpa [#allocation3], 1
    %344 = vsyncpa [#allocation6], 1
    %345 = vsyncpa [#allocation4], 1

</llo_original>
